<compile_context>
chip_gen: v5e
topology: v5e:2x2
jax: 0.10.0
libtpu: 0.0.40
codegen_flags: <defaults>
</compile_context>

<pallas_src>
import jax
import jax.numpy as jnp
from jax import lax
from jax.experimental import pallas as pl
from jax.experimental.pallas import tpu as pltpu


def _round_up(x, m):
    return (x + m - 1) // m * m


def _make_siglip_kernel(tile, n_valid, padded):
    def kernel(scale_ref, bias_ref, img_ref, txt_ref, out_ref, acc_ref):
        i = pl.program_id(0)
        j = pl.program_id(1)

        @pl.when(j == 0)
        def _():
            acc_ref[...] = jnp.zeros_like(acc_ref)

        scale = scale_ref[0]
        bias = bias_ref[0]

        # (TB, D) x (TB, D), contracting the last dim of both operands,
        # native-dtype inputs, f32 MXU accumulation -> (TB, TB).
        logits = lax.dot_general(
            img_ref[...], txt_ref[...],
            dimension_numbers=(((1,), (1,)), ((), ())),
            preferred_element_type=jnp.float32)
        logits = scale * logits + bias

        # log_sigmoid(z) = min(z, 0) - log1p(exp(-|z|)); |z| == |logits|
        softplus_term = jnp.log1p(jnp.exp(-jnp.abs(logits)))

        if padded:
            row_g = i * tile + lax.broadcasted_iota(jnp.int32, (tile, tile), 0)
            col_g = j * tile + lax.broadcasted_iota(jnp.int32, (tile, tile), 1)
            valid = jnp.logical_and(row_g < n_valid, col_g < n_valid)

        def _accumulate(z_min):
            contrib = z_min - softplus_term
            if padded:
                contrib = jnp.where(valid, contrib, 0.0)
            acc_ref[...] += contrib

        @pl.when(i != j)
        def _():
            # Off-diagonal tiles: labels are uniformly -1, so z = -logits.
            _accumulate(jnp.minimum(-logits, 0.0))

        @pl.when(i == j)
        def _():
            # Diagonal tile: labels are +1 on the diagonal, -1 elsewhere.
            r = lax.broadcasted_iota(jnp.int32, (tile, tile), 0)
            c = lax.broadcasted_iota(jnp.int32, (tile, tile), 1)
            z = jnp.where(r == c, logits, -logits)
            _accumulate(jnp.minimum(z, 0.0))

        @pl.when(j == pl.num_programs(1) - 1)
        def _():
            # Single cross-sublane reduction per row tile -> lane-dense row.
            out_ref[...] = jnp.sum(acc_ref[...], axis=0, keepdims=True)

    return kernel


def siglip_loss(image_features, text_features, logit_scale, logit_bias,
                *, block_n=256):
    """SigLipLoss.forward for world_size == 1 (no distributed exchange)."""
    n, d = image_features.shape
    assert text_features.shape == (n, d)

    # Tile size: lane/sublane friendly multiple of 128, no bigger than needed.
    tile = _round_up(min(block_n, _round_up(n, 128)), 128)
    n_pad = _round_up(n, tile)
    padded = n_pad != n
    if padded:
        pad = ((0, n_pad - n), (0, 0))
        image_features = jnp.pad(image_features, pad)
        text_features = jnp.pad(text_features, pad)

    grid = (n_pad // tile, n_pad // tile)
    scale = jnp.asarray(logit_scale, jnp.float32).reshape((1,))
    bias = jnp.asarray(logit_bias, jnp.float32).reshape((1,))

    kernel = _make_siglip_kernel(tile, n, padded)
    partials = pl.pallas_call(
        kernel,
        out_shape=jax.ShapeDtypeStruct((grid[0], tile), jnp.float32),
        grid_spec=pltpu.PrefetchScalarGridSpec(
            num_scalar_prefetch=0,
            grid=grid,
            in_specs=[
                pl.BlockSpec(memory_space=pltpu.MemorySpace.SMEM),  # logit_scale
                pl.BlockSpec(memory_space=pltpu.MemorySpace.SMEM),  # logit_bias
                pl.BlockSpec((tile, d), lambda i, j: (i, 0)),       # image rows
                pl.BlockSpec((tile, d), lambda i, j: (j, 0)),       # text rows
            ],
            out_specs=pl.BlockSpec((1, tile), lambda i, j: (i, 0)),
            scratch_shapes=[pltpu.VMEM((tile, tile), jnp.float32)],
        ),
        compiler_params=pltpu.CompilerParams(
            dimension_semantics=("parallel", "arbitrary")),
    )(scale, bias, image_features, text_features)

    # Final tiny reduction + normalization by the GLOBAL batch size.
    return -jnp.sum(partials) / jnp.float32(n)


def _siglip_loss_ref(image_features, text_features, logit_scale, logit_bias):
    """Pure-JAX reference identical to the PyTorch module semantics."""
    n = image_features.shape[0]
    logits = logit_scale * lax.dot_general(
        image_features, text_features,
        dimension_numbers=(((1,), (1,)), ((), ())),
        preferred_element_type=jnp.float32) + logit_bias
    labels = 2.0 * jnp.eye(n, dtype=jnp.float32) - 1.0
    return -jnp.sum(jax.nn.log_sigmoid(labels * logits)) / n


if __name__ == "__main__":
    key = jax.random.PRNGKey(0)

    def _make_features(k, n, d):
        x = jax.random.normal(k, (n, d), dtype=jnp.float32)
        x = x / jnp.linalg.norm(x, axis=-1, keepdims=True)
        return x.astype(jnp.bfloat16)  # native MXU dtype

    # SigLIP init: logit_scale = exp(log(10)) = 10, logit_bias = -10
    logit_scale = jnp.float32(10.0)
    logit_bias = jnp.float32(-10.0)

    k1, k2, k3, k4 = jax.random.split(key, 4)

    # Case 1: tiny single-tile case (batch=16, embed dim=32, padded to 128).
    img = _make_features(k1, 16, 32)
    txt = _make_features(k2, 16, 32)
    loss = jax.block_until_ready(siglip_loss(img, txt, logit_scale, logit_bias))
    ref = _siglip_loss_ref(img, txt, logit_scale, logit_bias)
    assert jnp.allclose(loss, ref, rtol=1e-4, atol=1e-4), (loss, ref)

    # Case 2: multi-tile 2x2 grid with padding and off-diagonal tiles.
    img2 = _make_features(k3, 160, 64)
    txt2 = _make_features(k4, 160, 64)
    loss2 = jax.block_until_ready(
        siglip_loss(img2, txt2, logit_scale, logit_bias, block_n=128))
    ref2 = _siglip_loss_ref(img2, txt2, logit_scale, logit_bias)
    assert jnp.allclose(loss2, ref2, rtol=1e-4, atol=1e-4), (loss2, ref2)

    print("KERNEL_OK")
</pallas_src>

<mosaic_0001>
module attributes {stable_mosaic.version = 11 : i64} {
  func.func @kernel(%arg0: i32, %arg1: i32, %arg2: memref<1xf32, #tpu.memory_space<smem>>, %arg3: memref<1xf32, #tpu.memory_space<smem>>, %arg4: memref<128x32xbf16, #tpu.memory_space<vmem>>, %arg5: memref<128x32xbf16, #tpu.memory_space<vmem>>, %arg6: memref<1x128xf32, #tpu.memory_space<vmem>>, %arg7: memref<128x128xf32, #tpu.memory_space<vmem>>) attributes {dimension_semantics = [#tpu.dimension_semantics<parallel>, #tpu.dimension_semantics<arbitrary>], iteration_bounds = array<i64: 1, 1>, scalar_prefetch = 0 : i64, scratch_operands = 1 : i64, tpu.core_type = #tpu.core_type<tc>, window_params = [{transform_indices = @transform_0, window_bounds = array<i64: 1>}, {transform_indices = @transform_1, window_bounds = array<i64: 1>}, {transform_indices = @transform_2, window_bounds = array<i64: 128, 32>}, {transform_indices = @transform_3, window_bounds = array<i64: 128, 32>}, {transform_indices = @transform_4, window_bounds = array<i64: 1, 128>}]} {
    %c0_i32 = arith.constant 0 : i32
    %0 = arith.cmpi eq, %arg1, %c0_i32 : i32
    %1 = arith.extui %0 : i1 to i32
    %c0_i32_0 = arith.constant 0 : i32
    %2 = arith.cmpi ne, %1, %c0_i32_0 : i32
    scf.if %2 {
      %cst_13 = arith.constant 0.000000e+00 : f32
      %39 = vector.broadcast %cst_13 : f32 to vector<128x128xf32>
      %c0_14 = arith.constant 0 : index
      %c0_15 = arith.constant 0 : index
      %40 = vector.load %arg7[%c0_14, %c0_15] : memref<128x128xf32, #tpu.memory_space<vmem>>, vector<128x128xf32>
      tpu.vector_store %arg7[%c0_14, %c0_15], %39 {strides = array<i32>} : memref<128x128xf32, #tpu.memory_space<vmem>>, vector<128x128xf32>,
    } else {
    }
    %c0 = arith.constant 0 : index
    %3 = memref.load %arg2[%c0] : memref<1xf32, #tpu.memory_space<smem>>
    %c0_1 = arith.constant 0 : index
    %4 = memref.load %arg3[%c0_1] : memref<1xf32, #tpu.memory_space<smem>>
    %c0_2 = arith.constant 0 : index
    %c0_3 = arith.constant 0 : index
    %5 = vector.load %arg4[%c0_2, %c0_3] : memref<128x32xbf16, #tpu.memory_space<vmem>>, vector<128x32xbf16>
    %c0_4 = arith.constant 0 : index
    %c0_5 = arith.constant 0 : index
    %6 = vector.load %arg5[%c0_4, %c0_5] : memref<128x32xbf16, #tpu.memory_space<vmem>>, vector<128x32xbf16>
    %cst = arith.constant dense<0.000000e+00> : vector<128x128xf32>
    %7 = tpu.matmul %5, %6, %cst {dimension_numbers = #tpu.dot_dimension_numbers<[1], [1], [0], [0], [0, 0, 1, 0], [], []>} : vector<128x32xbf16>, vector<128x32xbf16>, vector<128x128xf32> -> vector<128x128xf32>
    %8 = vector.broadcast %3 : f32 to vector<128x128xf32>
    %9 = arith.mulf %8, %7 : vector<128x128xf32>
    %10 = vector.broadcast %4 : f32 to vector<128x128xf32>
    %11 = arith.addf %9, %10 : vector<128x128xf32>
    %12 = math.absf %11 : vector<128x128xf32>
    %cst_6 = arith.constant 0.000000e+00 : f32
    %13 = vector.broadcast %cst_6 : f32 to vector<128x128xf32>
    %14 = arith.subf %13, %12 : vector<128x128xf32>
    %15 = math.exp %14 : vector<128x128xf32>
    %16 = math.log1p %15 : vector<128x128xf32>
    %c128_i32 = arith.constant 128 : i32
    %17 = arith.muli %arg0, %c128_i32 : i32
    %18 = tpu.iota {dimensions = array<i32: 0>} : vector<128x128xi32>
    %19 = vector.broadcast %17 : i32 to vector<128x128xi32>
    %20 = arith.addi %19, %18 : vector<128x128xi32>
    %c128_i32_7 = arith.constant 128 : i32
    %21 = arith.muli %arg1, %c128_i32_7 : i32
    %22 = tpu.iota {dimensions = array<i32: 1>} : vector<128x128xi32>
    %23 = vector.broadcast %21 : i32 to vector<128x128xi32>
    %24 = arith.addi %23, %22 : vector<128x128xi32>
    %c16_i32 = arith.constant 16 : i32
    %25 = vector.broadcast %c16_i32 : i32 to vector<128x128xi32>
    %26 = arith.cmpi slt, %20, %25 : vector<128x128xi32>
    %c16_i32_8 = arith.constant 16 : i32
    %27 = vector.broadcast %c16_i32_8 : i32 to vector<128x128xi32>
    %28 = arith.cmpi slt, %24, %27 : vector<128x128xi32>
    %29 = arith.andi %26, %28 : vector<128x128xi1>
    %30 = arith.cmpi ne, %arg0, %arg1 : i32
    %31 = arith.extui %30 : i1 to i32
    %c0_i32_9 = arith.constant 0 : i32
    %32 = arith.cmpi ne, %31, %c0_i32_9 : i32
    scf.if %32 {
      %cst_13 = arith.constant 0.000000e+00 : f32
      %39 = vector.broadcast %cst_13 : f32 to vector<128x128xf32>
      %40 = arith.subf %39, %11 : vector<128x128xf32>
      %cst_14 = arith.constant 0.000000e+00 : f32
      %41 = vector.broadcast %cst_14 : f32 to vector<128x128xf32>
      %42 = arith.minimumf %40, %41 : vector<128x128xf32>
      %43 = arith.subf %42, %16 : vector<128x128xf32>
      %cst_15 = arith.constant 0.000000e+00 : f32
      %44 = vector.broadcast %cst_15 : f32 to vector<128x128xf32>
      %45 = arith.select %29, %43, %44 : vector<128x128xi1>, vector<128x128xf32>
      %c0_16 = arith.constant 0 : index
      %c0_17 = arith.constant 0 : index
      %46 = vector.load %arg7[%c0_16, %c0_17] : memref<128x128xf32, #tpu.memory_space<vmem>>, vector<128x128xf32>
      %47 = arith.addf %46, %45 : vector<128x128xf32>
      %c0_18 = arith.constant 0 : index
      %c0_19 = arith.constant 0 : index
      %48 = vector.load %arg7[%c0_18, %c0_19] : memref<128x128xf32, #tpu.memory_space<vmem>>, vector<128x128xf32>
      tpu.vector_store %arg7[%c0_18, %c0_19], %47 {strides = array<i32>} : memref<128x128xf32, #tpu.memory_space<vmem>>, vector<128x128xf32>,
    } else {
    }
    %33 = arith.cmpi eq, %arg0, %arg1 : i32
    %34 = arith.extui %33 : i1 to i32
    %c0_i32_10 = arith.constant 0 : i32
    %35 = arith.cmpi ne, %34, %c0_i32_10 : i32
    scf.if %35 {
      %39 = tpu.iota {dimensions = array<i32: 0>} : vector<128x128xi32>
      %40 = tpu.iota {dimensions = array<i32: 1>} : vector<128x128xi32>
      %41 = arith.cmpi eq, %39, %40 : vector<128x128xi32>
      %cst_13 = arith.constant 0.000000e+00 : f32
      %42 = vector.broadcast %cst_13 : f32 to vector<128x128xf32>
      %43 = arith.subf %42, %11 : vector<128x128xf32>
      %44 = arith.select %41, %11, %43 : vector<128x128xi1>, vector<128x128xf32>
      %cst_14 = arith.constant 0.000000e+00 : f32
      %45 = vector.broadcast %cst_14 : f32 to vector<128x128xf32>
      %46 = arith.minimumf %44, %45 : vector<128x128xf32>
      %47 = arith.subf %46, %16 : vector<128x128xf32>
      %cst_15 = arith.constant 0.000000e+00 : f32
      %48 = vector.broadcast %cst_15 : f32 to vector<128x128xf32>
      %49 = arith.select %29, %47, %48 : vector<128x128xi1>, vector<128x128xf32>
      %c0_16 = arith.constant 0 : index
      %c0_17 = arith.constant 0 : index
      %50 = vector.load %arg7[%c0_16, %c0_17] : memref<128x128xf32, #tpu.memory_space<vmem>>, vector<128x128xf32>
      %51 = arith.addf %50, %49 : vector<128x128xf32>
      %c0_18 = arith.constant 0 : index
      %c0_19 = arith.constant 0 : index
      %52 = vector.load %arg7[%c0_18, %c0_19] : memref<128x128xf32, #tpu.memory_space<vmem>>, vector<128x128xf32>
      tpu.vector_store %arg7[%c0_18, %c0_19], %51 {strides = array<i32>} : memref<128x128xf32, #tpu.memory_space<vmem>>, vector<128x128xf32>,
    } else {
    }
    %c0_i32_11 = arith.constant 0 : i32
    %36 = arith.cmpi eq, %arg1, %c0_i32_11 : i32
    %37 = arith.extui %36 : i1 to i32
    %c0_i32_12 = arith.constant 0 : i32
    %38 = arith.cmpi ne, %37, %c0_i32_12 : i32
    scf.if %38 {
      %c0_13 = arith.constant 0 : index
      %c0_14 = arith.constant 0 : index
      %39 = vector.load %arg7[%c0_13, %c0_14] : memref<128x128xf32, #tpu.memory_space<vmem>>, vector<128x128xf32>
      %cst_15 = arith.constant dense<0.000000e+00> : vector<128xf32>
      %40 = vector.multi_reduction <add>, %39, %cst_15 [0] : vector<128x128xf32> to vector<128xf32>
      %41 = vector.shape_cast %40 : vector<128xf32> to vector<1x128xf32>
      %c0_16 = arith.constant 0 : index
      %c0_17 = arith.constant 0 : index
      %42 = vector.load %arg6[%c0_16, %c0_17] : memref<1x128xf32, #tpu.memory_space<vmem>>, vector<1x128xf32>
      tpu.vector_store %arg6[%c0_16, %c0_17], %41 {strides = array<i32>} : memref<1x128xf32, #tpu.memory_space<vmem>>, vector<1x128xf32>,
    } else {
    }
    return
  }
  func.func @transform_0(%arg0: i32, %arg1: i32) -> i32 {
    %c0_i32 = arith.constant 0 : i32
    %c0_i32_0 = arith.constant 0 : i32
    return %c0_i32 : i32
  }
  func.func @transform_1(%arg0: i32, %arg1: i32) -> i32 {
    %c0_i32 = arith.constant 0 : i32
    %c0_i32_0 = arith.constant 0 : i32
    return %c0_i32 : i32
  }
  func.func @transform_2(%arg0: i32, %arg1: i32) -> (i32, i32) {
    %c0_i32 = arith.constant 0 : i32
    %c0_i32_0 = arith.constant 0 : i32
    return %arg0, %c0_i32 : i32, i32
  }
  func.func @transform_3(%arg0: i32, %arg1: i32) -> (i32, i32) {
    %c0_i32 = arith.constant 0 : i32
    %c0_i32_0 = arith.constant 0 : i32
    return %arg1, %c0_i32 : i32, i32
  }
  func.func @transform_4(%arg0: i32, %arg1: i32) -> (i32, i32) {
    %c0_i32 = arith.constant 0 : i32
    %c0_i32_0 = arith.constant 0 : i32
    return %arg0, %c0_i32 : i32, i32
  }
}

</mosaic_0001>

<llo_original>
// kernel: tpu_custom_call.1
$region0: #{tpu_custom_call.1}
  #allocation0 [shape = 'u32[]', space=smem, size = 0x4, offset = 0x4, fixed_abs, tag = 'smem constant byte address 0x4 - core index']
  #allocation1 [shape = 'u32[72,128]{1,0:T(1,128)}', space=vmem, size = 0x9000, scoped, tag = 'internal scratch']
  #allocation2 [shape = 'f32[128,128]{1,0:T(8,128)}', space=vmem, size = 0x10000, scoped, tag = 'scratch operand']
  #allocation3 [shape = 'f32[1]{0:T(128)S(6)}', space=smem, size = 0x200, scoped, tag = 'scoped memory for tpu_custom_call.1']
  #allocation4 [shape = 'f32[1]{0:T(128)S(6)}', space=smem, size = 0x200, scoped, tag = 'scoped memory for tpu_custom_call.1']
  %s0 = inlined_call_operand.<no memory space> [shape: f32[1], index: 0, kind: input, shape index: {}]
  %s1 = inlined_call_operand.<no memory space> [shape: f32[1], index: 1, kind: input, shape index: {}]
  %s2 = inlined_call_operand.vmem [shape: bf16[128,32], index: 2, kind: input, shape index: {}]
  %s3 = inlined_call_operand.vmem [shape: bf16[128,32], index: 3, kind: input, shape index: {}]
  %s4 = inlined_call_operand.hbm [shape: f32[1,128], index: 4, kind: output, shape index: {}]
  %s5 = sld [smem:[#allocation0]]
  $region42: #{tpu_custom_call.1} parent=0
    _
  %s7 = ssub.s32 1, %s5
  %s8 = scalar_select 0, %s7, %s5
  %9 = sst [smem:[#allocation3]] %s0
  %10 = sst [smem:[#allocation4]] %s1
  $region1: #{tpu_custom_call.1} parent=0
    #allocation5 [shape = 'u8[512]{0}', space=vmem, size = 0x400, scoped, tag = 'output window, operand 0, single buffered']
    #allocation6 [shape = 's32[1]{0}', space=sflag, size = 0x4, scoped, tag = 'scoped memory for tpu_custom_call.1']
    %11 = vsyncpa [#allocation6], 0
    // Predicated region
    $region2: #{tpu_custom_call.1} parent=1 // pred_check
      _
    $region3: #{tpu_custom_call.1} parent=1 // pred_check_branch
      %13 = sbr.rel (0) target = $region5
    $region4: #{tpu_custom_call.1} parent=1 // pred_region
      _
    $region5: #{tpu_custom_call.1} parent=1 // pred_fallthru
      _
    // Predicated region
    $region6: #{tpu_custom_call.1} parent=1 // pred_check
      _
    $region7: #{tpu_custom_call.1} parent=1 // pred_check_branch
      %15 = sbr.rel (0) target = $region9
    $region8: #{tpu_custom_call.1} parent=1 // pred_region
      _
    $region9: #{tpu_custom_call.1} parent=1 // pred_fallthru
      _
    // Predicated region
    $region10: #{tpu_custom_call.1} parent=1 // pred_check
      _
    $region11: #{tpu_custom_call.1} parent=1 // pred_check_branch
      %17 = sbr.rel (0) target = $region13
    $region12: #{tpu_custom_call.1} parent=1 // pred_region
      _
    $region13: #{tpu_custom_call.1} parent=1 // pred_fallthru
      _
    // Predicated region
    $region14: #{tpu_custom_call.1} parent=1 // pred_check
      _
    $region15: #{tpu_custom_call.1} parent=1 // pred_check_branch
      %19 = sbr.rel (0) target = $region17
    $region16: #{tpu_custom_call.1} parent=1 // pred_region
      _
    $region17: #{tpu_custom_call.1} parent=1 // pred_fallthru
      _
    %p20 = scmp.eq.s32.totalorder 0, 0
    // Predicated region
    $region18: #{tpu_custom_call.1} parent=1 // pred_check
      %p21 = pneg %p20
    $region19: #{tpu_custom_call.1} parent=1 // pred_check_branch
      %23 = sbr.rel (%p21) target = $region21
    $region20: #{tpu_custom_call.1} parent=1 // pred_region
      %24 = vst [vmem:[#allocation2] sm:$0xff] 0.0
      %25 = vst [vmem:[#allocation2 + $0x8] sm:$0xff] 0.0
      %26 = vst [vmem:[#allocation2 + $0x10] sm:$0xff] 0.0
      %27 = vst [vmem:[#allocation2 + $0x18] sm:$0xff] 0.0
      %28 = vst [vmem:[#allocation2 + $0x20] sm:$0xff] 0.0
      %29 = vst [vmem:[#allocation2 + $0x28] sm:$0xff] 0.0
      %30 = vst [vmem:[#allocation2 + $0x30] sm:$0xff] 0.0
      %31 = vst [vmem:[#allocation2 + $0x38] sm:$0xff] 0.0
      %32 = vst [vmem:[#allocation2 + $0x40] sm:$0xff] 0.0
      %33 = vst [vmem:[#allocation2 + $0x48] sm:$0xff] 0.0
      %34 = vst [vmem:[#allocation2 + $0x50] sm:$0xff] 0.0
      %35 = vst [vmem:[#allocation2 + $0x58] sm:$0xff] 0.0
      %36 = vst [vmem:[#allocation2 + $0x60] sm:$0xff] 0.0
      %37 = vst [vmem:[#allocation2 + $0x68] sm:$0xff] 0.0
      %38 = vst [vmem:[#allocation2 + $0x70] sm:$0xff] 0.0
      %39 = vst [vmem:[#allocation2 + $0x78] sm:$0xff] 0.0
    $region21: #{tpu_custom_call.1} parent=1 // pred_fallthru
      _
    %s40 = sld [smem:[#allocation3]]
    %s41 = sld [smem:[#allocation4]]
    %v42 = vld [vmem:[%s2] sm:$0xf]
    %v43 = vld [vmem:[%s2 + $0x4] sm:$0xf]
    %v44 = vld [vmem:[%s2 + $0x8] sm:$0xf]
    %v45 = vld [vmem:[%s2 + $0xc] sm:$0xf]
    %v46 = vld [vmem:[%s2 + $0x10] sm:$0xf]
    %v47 = vld [vmem:[%s2 + $0x14] sm:$0xf]
    %v48 = vld [vmem:[%s2 + $0x18] sm:$0xf]
    %v49 = vld [vmem:[%s2 + $0x1c] sm:$0xf]
    %v50 = vld [vmem:[%s2 + $0x20] sm:$0xf]
    %v51 = vld [vmem:[%s2 + $0x24] sm:$0xf]
    %v52 = vld [vmem:[%s2 + $0x28] sm:$0xf]
    %v53 = vld [vmem:[%s2 + $0x2c] sm:$0xf]
    %v54 = vld [vmem:[%s2 + $0x30] sm:$0xf]
    %v55 = vld [vmem:[%s2 + $0x34] sm:$0xf]
    %v56 = vld [vmem:[%s2 + $0x38] sm:$0xf]
    %v57 = vld [vmem:[%s2 + $0x3c] sm:$0xf]
    %v58 = vld [vmem:[%s3] sm:$0xf]
    %v59 = vld [vmem:[%s3 + $0x4] sm:$0xf]
    %v60 = vld [vmem:[%s3 + $0x8] sm:$0xf]
    %v61 = vld [vmem:[%s3 + $0xc] sm:$0xf]
    %v62 = vld [vmem:[%s3 + $0x10] sm:$0xf]
    %v63 = vld [vmem:[%s3 + $0x14] sm:$0xf]
    %v64 = vld [vmem:[%s3 + $0x18] sm:$0xf]
    %v65 = vld [vmem:[%s3 + $0x1c] sm:$0xf]
    %v66 = vld [vmem:[%s3 + $0x20] sm:$0xf]
    %v67 = vld [vmem:[%s3 + $0x24] sm:$0xf]
    %v68 = vld [vmem:[%s3 + $0x28] sm:$0xf]
    %v69 = vld [vmem:[%s3 + $0x2c] sm:$0xf]
    %v70 = vld [vmem:[%s3 + $0x30] sm:$0xf]
    %v71 = vld [vmem:[%s3 + $0x34] sm:$0xf]
    %v72 = vld [vmem:[%s3 + $0x38] sm:$0xf]
    %v73 = vld [vmem:[%s3 + $0x3c] sm:$0xf]
    %v90 = vunpack.c.l.b16 %v42
    %v91 = vunpack.c.l.b16 %v43
    %v92 = vunpack.c.l.b16 %v44
    %v93 = vunpack.c.l.b16 %v45
    %v94 = vunpack.c.l.b16 %v46
    %v95 = vunpack.c.l.b16 %v47
    %v96 = vunpack.c.l.b16 %v48
    %v97 = vunpack.c.l.b16 %v49
    %v98 = vunpack.c.l.b16 %v50
    %v99 = vunpack.c.l.b16 %v51
    %v100 = vunpack.c.l.b16 %v52
    %v101 = vunpack.c.l.b16 %v53
    %v102 = vunpack.c.l.b16 %v54
    %v103 = vunpack.c.l.b16 %v55
    %v104 = vunpack.c.l.b16 %v56
    %v105 = vunpack.c.l.b16 %v57
    %v106 = vpack.c.b16 %v91, %v90
    %v107 = vpack.c.b16 %v93, %v92
    %v108 = vpack.c.b16 %v95, %v94
    %v109 = vpack.c.b16 %v97, %v96
    %v110 = vpack.c.b16 %v99, %v98
    %v111 = vpack.c.b16 %v101, %v100
    %v112 = vpack.c.b16 %v103, %v102
    %v113 = vpack.c.b16 %v105, %v104
    %v130 = vunpack.c.l.b16 %v58
    %v131 = vunpack.c.l.b16 %v59
    %v132 = vunpack.c.l.b16 %v60
    %v133 = vunpack.c.l.b16 %v61
    %v134 = vunpack.c.l.b16 %v62
    %v135 = vunpack.c.l.b16 %v63
    %v136 = vunpack.c.l.b16 %v64
    %v137 = vunpack.c.l.b16 %v65
    %v138 = vunpack.c.l.b16 %v66
    %v139 = vunpack.c.l.b16 %v67
    %v140 = vunpack.c.l.b16 %v68
    %v141 = vunpack.c.l.b16 %v69
    %v142 = vunpack.c.l.b16 %v70
    %v143 = vunpack.c.l.b16 %v71
    %v144 = vunpack.c.l.b16 %v72
    %v145 = vunpack.c.l.b16 %v73
    %v146 = vpack.c.b16 %v131, %v130
    %v147 = vpack.c.b16 %v133, %v132
    %v148 = vpack.c.b16 %v135, %v134
    %v149 = vpack.c.b16 %v137, %v136
    %v150 = vpack.c.b16 %v139, %v138
    %v151 = vpack.c.b16 %v141, %v140
    %v152 = vpack.c.b16 %v143, %v142
    %v153 = vpack.c.b16 %v145, %v144
    %vm154 = vcmask 261120
    %v156 = vsel %vm154, %v106, 0
    %v159 = vsel %vm154, %v107, 0
    %v162 = vsel %vm154, %v108, 0
    %v165 = vsel %vm154, %v109, 0
    %v168 = vsel %vm154, %v110, 0
    %v171 = vsel %vm154, %v111, 0
    %v174 = vsel %vm154, %v112, 0
    %v177 = vsel %vm154, %v113, 0
    %v180 = vsel %vm154, %v146, 0
    %v183 = vsel %vm154, %v147, 0
    %v186 = vsel %vm154, %v148, 0
    %v189 = vsel %vm154, %v149, 0
    %v192 = vsel %vm154, %v150, 0
    %v195 = vsel %vm154, %v151, 0
    %v198 = vsel %vm154, %v152, 0
    %v201 = vsel %vm154, %v153, 0
    %203 = vmatpush.bf16.xpose.msra.mxu0 %v201
    %204 = vmatpush.bf16.xpose.msra.mxu0 %v198
    %205 = vmatpush.bf16.xpose.msra.mxu0 %v195
    %206 = vmatpush.bf16.xpose.msra.mxu0 %v192
    %207 = vmatpush.bf16.xpose.msra.mxu0 %v189
    %208 = vmatpush.bf16.xpose.msra.mxu0 %v186
    %209 = vmatpush.bf16.xpose.msra.mxu0 %v183
    %210 = vmatpush.bf16.xpose.msra.mxu0 %v180
    %211 = vmatmul.bf16.gmra.mxu0 %v156
    %v212 = vpop.f32.mrf.mxu0
    %v213 = vadd.f32 0.0, %v212
    %v214 = vpop.f32.mrf.mxu0
    %v215 = vadd.f32 0.0, %v214
    %216 = vmatmul.bf16.gmra.mxu0 %v159
    %v217 = vpop.f32.mrf.mxu0
    %v218 = vadd.f32 0.0, %v217
    %v219 = vpop.f32.mrf.mxu0
    %v220 = vadd.f32 0.0, %v219
    %221 = vmatmul.bf16.gmra.mxu0 %v162
    %v222 = vpop.f32.mrf.mxu0
    %v223 = vadd.f32 0.0, %v222
    %v224 = vpop.f32.mrf.mxu0
    %v225 = vadd.f32 0.0, %v224
    %226 = vmatmul.bf16.gmra.mxu0 %v165
    %v227 = vpop.f32.mrf.mxu0
    %v228 = vadd.f32 0.0, %v227
    %v229 = vpop.f32.mrf.mxu0
    %v230 = vadd.f32 0.0, %v229
    %231 = vmatmul.bf16.gmra.mxu0 %v168
    %v232 = vpop.f32.mrf.mxu0
    %v233 = vadd.f32 0.0, %v232
    %v234 = vpop.f32.mrf.mxu0
    %v235 = vadd.f32 0.0, %v234
    %236 = vmatmul.bf16.gmra.mxu0 %v171
    %v237 = vpop.f32.mrf.mxu0
    %v238 = vadd.f32 0.0, %v237
    %v239 = vpop.f32.mrf.mxu0
    %v240 = vadd.f32 0.0, %v239
    %241 = vmatmul.bf16.gmra.mxu0 %v174
    %v242 = vpop.f32.mrf.mxu0
    %v243 = vadd.f32 0.0, %v242
    %v244 = vpop.f32.mrf.mxu0
    %v245 = vadd.f32 0.0, %v244
    %246 = vmatmul.bf16.gmra.mxu0 %v177
    %v247 = vpop.f32.mrf.mxu0
    %v248 = vadd.f32 0.0, %v247
    %v249 = vpop.f32.mrf.mxu0
    %v250 = vadd.f32 0.0, %v249
    %251 = vdwg.mxu0
    %v252 = vstv %s40
    %v253 = vmul.f32 %v252, %v213
    %v254 = vmul.f32 %v252, %v215
    %v255 = vmul.f32 %v252, %v218
    %v256 = vmul.f32 %v252, %v220
    %v257 = vmul.f32 %v252, %v223
    %v258 = vmul.f32 %v252, %v225
    %v259 = vmul.f32 %v252, %v228
    %v260 = vmul.f32 %v252, %v230
    %v261 = vmul.f32 %v252, %v233
    %v262 = vmul.f32 %v252, %v235
    %v263 = vmul.f32 %v252, %v238
    %v264 = vmul.f32 %v252, %v240
    %v265 = vmul.f32 %v252, %v243
    %v266 = vmul.f32 %v252, %v245
    %v267 = vmul.f32 %v252, %v248
    %v268 = vmul.f32 %v252, %v250
    %v269 = vstv %s41
    %v270 = vadd.f32 %v253, %v269
    %v271 = vadd.f32 %v254, %v269
    %v272 = vadd.f32 %v255, %v269
    %v273 = vadd.f32 %v256, %v269
    %v274 = vadd.f32 %v257, %v269
    %v275 = vadd.f32 %v258, %v269
    %v276 = vadd.f32 %v259, %v269
    %v277 = vadd.f32 %v260, %v269
    %v278 = vadd.f32 %v261, %v269
    %v279 = vadd.f32 %v262, %v269
    %v280 = vadd.f32 %v263, %v269
    %v281 = vadd.f32 %v264, %v269
    %v282 = vadd.f32 %v265, %v269
    %v283 = vadd.f32 %v266, %v269
    %v284 = vadd.f32 %v267, %v269
    %v285 = vadd.f32 %v268, %v269
    %v286 = vand.u32 2147483647, %v270
    %v287 = vand.u32 2147483647, %v271
    %v288 = vand.u32 2147483647, %v272
    %v289 = vand.u32 2147483647, %v273
    %v290 = vand.u32 2147483647, %v274
    %v291 = vand.u32 2147483647, %v275
    %v292 = vand.u32 2147483647, %v276
    %v293 = vand.u32 2147483647, %v277
    %v294 = vand.u32 2147483647, %v278
    %v295 = vand.u32 2147483647, %v279
    %v296 = vand.u32 2147483647, %v280
    %v297 = vand.u32 2147483647, %v281
    %v298 = vand.u32 2147483647, %v282
    %v299 = vand.u32 2147483647, %v283
    %v300 = vand.u32 2147483647, %v284
    %v301 = vand.u32 2147483647, %v285
    %v302 = vsub.f32 0.0, %v286
    %v303 = vsub.f32 0.0, %v287
    %v304 = vsub.f32 0.0, %v288
    %v305 = vsub.f32 0.0, %v289
    %v306 = vsub.f32 0.0, %v290
    %v307 = vsub.f32 0.0, %v291
    %v308 = vsub.f32 0.0, %v292
    %v309 = vsub.f32 0.0, %v293
    %v310 = vsub.f32 0.0, %v294
    %v311 = vsub.f32 0.0, %v295
    %v312 = vsub.f32 0.0, %v296
    %v313 = vsub.f32 0.0, %v297
    %v314 = vsub.f32 0.0, %v298
    %v315 = vsub.f32 0.0, %v299
    %v316 = vsub.f32 0.0, %v300
    %v317 = vsub.f32 0.0, %v301
    %v318 = vmul.f32 %v302, 1.442695
    %v319 = vpow.pop %v318
    %v320 = vmul.f32 %v303, 1.442695
    %v321 = vpow.pop %v320
    %v322 = vmul.f32 %v304, 1.442695
    %v323 = vpow.pop %v322
    %v324 = vmul.f32 %v305, 1.442695
    %v325 = vpow.pop %v324
    %v326 = vmul.f32 %v306, 1.442695
    %v327 = vpow.pop %v326
    %v328 = vmul.f32 %v307, 1.442695
    %v329 = vpow.pop %v328
    %v330 = vmul.f32 %v308, 1.442695
    %v331 = vpow.pop %v330
    %v332 = vmul.f32 %v309, 1.442695
    %v333 = vpow.pop %v332
    %v334 = vmul.f32 %v310, 1.442695
    %v335 = vpow.pop %v334
    %v336 = vmul.f32 %v311, 1.442695
    %v337 = vpow.pop %v336
    %v338 = vmul.f32 %v312, 1.442695
    %v339 = vpow.pop %v338
    %v340 = vmul.f32 %v313, 1.442695
    %v341 = vpow.pop %v340
    %v342 = vmul.f32 %v314, 1.442695
    %v343 = vpow.pop %v342
    %v344 = vmul.f32 %v315, 1.442695
    %v345 = vpow.pop %v344
    %v346 = vmul.f32 %v316, 1.442695
    %v347 = vpow.pop %v346
    %v348 = vmul.f32 %v317, 1.442695
    %v349 = vpow.pop %v348
    %v350 = vadd.f32 %v319, 1.0
    %v351 = vlog2.pop %v350
    %v352 = vmul.f32 %v351, 0.6931472
    %v353 = vmul.f32 -0.5, %v319
    %v354 = vadd.f32 %v353, 1.0
    %v355 = vmul.f32 %v354, %v319
    %v356 = vand.u32 2147483647, %v319
    %vm357 = vcmp.lt.f32.partialorder %v356, 0.0004427343
    %v358 = vsel %vm357, %v355, %v352
    %v359 = vadd.f32 %v321, 1.0
    %v360 = vlog2.pop %v359
    %v361 = vmul.f32 %v360, 0.6931472
    %v362 = vmul.f32 -0.5, %v321
    %v363 = vadd.f32 %v362, 1.0
    %v364 = vmul.f32 %v363, %v321
    %v365 = vand.u32 2147483647, %v321
    %vm366 = vcmp.lt.f32.partialorder %v365, 0.0004427343
    %v367 = vsel %vm366, %v364, %v361
    %v368 = vadd.f32 %v323, 1.0
    %v369 = vlog2.pop %v368
    %v370 = vmul.f32 %v369, 0.6931472
    %v371 = vmul.f32 -0.5, %v323
    %v372 = vadd.f32 %v371, 1.0
    %v373 = vmul.f32 %v372, %v323
    %v374 = vand.u32 2147483647, %v323
    %vm375 = vcmp.lt.f32.partialorder %v374, 0.0004427343
    %v376 = vsel %vm375, %v373, %v370
    %v377 = vadd.f32 %v325, 1.0
    %v378 = vlog2.pop %v377
    %v379 = vmul.f32 %v378, 0.6931472
    %v380 = vmul.f32 -0.5, %v325
    %v381 = vadd.f32 %v380, 1.0
    %v382 = vmul.f32 %v381, %v325
    %v383 = vand.u32 2147483647, %v325
    %vm384 = vcmp.lt.f32.partialorder %v383, 0.0004427343
    %v385 = vsel %vm384, %v382, %v379
    %v386 = vadd.f32 %v327, 1.0
    %v387 = vlog2.pop %v386
    %v388 = vmul.f32 %v387, 0.6931472
    %v389 = vmul.f32 -0.5, %v327
    %v390 = vadd.f32 %v389, 1.0
    %v391 = vmul.f32 %v390, %v327
    %v392 = vand.u32 2147483647, %v327
    %vm393 = vcmp.lt.f32.partialorder %v392, 0.0004427343
    %v394 = vsel %vm393, %v391, %v388
    %v395 = vadd.f32 %v329, 1.0
    %v396 = vlog2.pop %v395
    %v397 = vmul.f32 %v396, 0.6931472
    %v398 = vmul.f32 -0.5, %v329
    %v399 = vadd.f32 %v398, 1.0
    %v400 = vmul.f32 %v399, %v329
    %v401 = vand.u32 2147483647, %v329
    %vm402 = vcmp.lt.f32.partialorder %v401, 0.0004427343
    %v403 = vsel %vm402, %v400, %v397
    %v404 = vadd.f32 %v331, 1.0
    %v405 = vlog2.pop %v404
    %v406 = vmul.f32 %v405, 0.6931472
    %v407 = vmul.f32 -0.5, %v331
    %v408 = vadd.f32 %v407, 1.0
    %v409 = vmul.f32 %v408, %v331
    %v410 = vand.u32 2147483647, %v331
    %vm411 = vcmp.lt.f32.partialorder %v410, 0.0004427343
    %v412 = vsel %vm411, %v409, %v406
    %v413 = vadd.f32 %v333, 1.0
    %v414 = vlog2.pop %v413
    %v415 = vmul.f32 %v414, 0.6931472
    %v416 = vmul.f32 -0.5, %v333
    %v417 = vadd.f32 %v416, 1.0
    %v418 = vmul.f32 %v417, %v333
    %v419 = vand.u32 2147483647, %v333
    %vm420 = vcmp.lt.f32.partialorder %v419, 0.0004427343
    %v421 = vsel %vm420, %v418, %v415
    %v422 = vadd.f32 %v335, 1.0
    %v423 = vlog2.pop %v422
    %v424 = vmul.f32 %v423, 0.6931472
    %v425 = vmul.f32 -0.5, %v335
    %v426 = vadd.f32 %v425, 1.0
    %v427 = vmul.f32 %v426, %v335
    %v428 = vand.u32 2147483647, %v335
    %vm429 = vcmp.lt.f32.partialorder %v428, 0.0004427343
    %v430 = vsel %vm429, %v427, %v424
    %v431 = vadd.f32 %v337, 1.0
    %v432 = vlog2.pop %v431
    %v433 = vmul.f32 %v432, 0.6931472
    %v434 = vmul.f32 -0.5, %v337
    %v435 = vadd.f32 %v434, 1.0
    %v436 = vmul.f32 %v435, %v337
    %v437 = vand.u32 2147483647, %v337
    %vm438 = vcmp.lt.f32.partialorder %v437, 0.0004427343
    %v439 = vsel %vm438, %v436, %v433
    %v440 = vadd.f32 %v339, 1.0
    %v441 = vlog2.pop %v440
    %v442 = vmul.f32 %v441, 0.6931472
    %v443 = vmul.f32 -0.5, %v339
    %v444 = vadd.f32 %v443, 1.0
    %v445 = vmul.f32 %v444, %v339
    %v446 = vand.u32 2147483647, %v339
    %vm447 = vcmp.lt.f32.partialorder %v446, 0.0004427343
    %v448 = vsel %vm447, %v445, %v442
    %v449 = vadd.f32 %v341, 1.0
    %v450 = vlog2.pop %v449
    %v451 = vmul.f32 %v450, 0.6931472
    %v452 = vmul.f32 -0.5, %v341
    %v453 = vadd.f32 %v452, 1.0
    %v454 = vmul.f32 %v453, %v341
    %v455 = vand.u32 2147483647, %v341
    %vm456 = vcmp.lt.f32.partialorder %v455, 0.0004427343
    %v457 = vsel %vm456, %v454, %v451
    %v458 = vadd.f32 %v343, 1.0
    %v459 = vlog2.pop %v458
    %v460 = vmul.f32 %v459, 0.6931472
    %v461 = vmul.f32 -0.5, %v343
    %v462 = vadd.f32 %v461, 1.0
    %v463 = vmul.f32 %v462, %v343
    %v464 = vand.u32 2147483647, %v343
    %vm465 = vcmp.lt.f32.partialorder %v464, 0.0004427343
    %v466 = vsel %vm465, %v463, %v460
    %v467 = vadd.f32 %v345, 1.0
    %v468 = vlog2.pop %v467
    %v469 = vmul.f32 %v468, 0.6931472
    %v470 = vmul.f32 -0.5, %v345
    %v471 = vadd.f32 %v470, 1.0
    %v472 = vmul.f32 %v471, %v345
    %v473 = vand.u32 2147483647, %v345
    %vm474 = vcmp.lt.f32.partialorder %v473, 0.0004427343
    %v475 = vsel %vm474, %v472, %v469
    %v476 = vadd.f32 %v347, 1.0
    %v477 = vlog2.pop %v476
    %v478 = vmul.f32 %v477, 0.6931472
    %v479 = vmul.f32 -0.5, %v347
    %v480 = vadd.f32 %v479, 1.0
    %v481 = vmul.f32 %v480, %v347
    %v482 = vand.u32 2147483647, %v347
    %vm483 = vcmp.lt.f32.partialorder %v482, 0.0004427343
    %v484 = vsel %vm483, %v481, %v478
    %v485 = vadd.f32 %v349, 1.0
    %v486 = vlog2.pop %v485
    %v487 = vmul.f32 %v486, 0.6931472
    %v488 = vmul.f32 -0.5, %v349
    %v489 = vadd.f32 %v488, 1.0
    %v490 = vmul.f32 %v489, %v349
    %v491 = vand.u32 2147483647, %v349
    %vm492 = vcmp.lt.f32.partialorder %v491, 0.0004427343
    %v493 = vsel %vm492, %v490, %v487
    %s494 = smul.u32 0, 128
    %v495 = vlaneseq
    %v496 = vshrl.u32 %v495, 7
    %v497 = vadd.s32 %v496, 8
    %v498 = vadd.s32 %v496, 16
    %v499 = vadd.s32 %v496, 24
    %v500 = vadd.s32 %v496, 32
    %v501 = vadd.s32 %v496, 40
    %v502 = vadd.s32 %v496, 48
    %v503 = vadd.s32 %v496, 56
    %v504 = vadd.s32 %v496, 64
    %v505 = vadd.s32 %v496, 72
    %v506 = vadd.s32 %v496, 80
    %v507 = vadd.s32 %v496, 88
    %v508 = vadd.s32 %v496, 96
    %v509 = vadd.s32 %v496, 104
    %v510 = vadd.s32 %v496, 112
    %v511 = vadd.s32 %v496, 120
    %v512 = vstv %s494
    %v513 = vadd.s32 %v512, %v496
    %v514 = vadd.s32 %v512, %v497
    %v515 = vadd.s32 %v512, %v498
    %v516 = vadd.s32 %v512, %v499
    %v517 = vadd.s32 %v512, %v500
    %v518 = vadd.s32 %v512, %v501
    %v519 = vadd.s32 %v512, %v502
    %v520 = vadd.s32 %v512, %v503
    %v521 = vadd.s32 %v512, %v504
    %v522 = vadd.s32 %v512, %v505
    %v523 = vadd.s32 %v512, %v506
    %v524 = vadd.s32 %v512, %v507
    %v525 = vadd.s32 %v512, %v508
    %v526 = vadd.s32 %v512, %v509
    %v527 = vadd.s32 %v512, %v510
    %v528 = vadd.s32 %v512, %v511
    %s529 = smul.u32 0, 128
    %v530 = vlaneseq
    %v531 = vand.u32 %v530, 127
    %v532 = vstv %s529
    %v533 = vadd.s32 %v532, %v531
    %vm534 = vcmp.lt.s32.totalorder %v513, 16
    %vm535 = vcmp.lt.s32.totalorder %v514, 16
    %vm536 = vcmp.lt.s32.totalorder %v515, 16
    %vm537 = vcmp.lt.s32.totalorder %v516, 16
    %vm538 = vcmp.lt.s32.totalorder %v517, 16
    %vm539 = vcmp.lt.s32.totalorder %v518, 16
    %vm540 = vcmp.lt.s32.totalorder %v519, 16
    %vm541 = vcmp.lt.s32.totalorder %v520, 16
    %vm542 = vcmp.lt.s32.totalorder %v521, 16
    %vm543 = vcmp.lt.s32.totalorder %v522, 16
    %vm544 = vcmp.lt.s32.totalorder %v523, 16
    %vm545 = vcmp.lt.s32.totalorder %v524, 16
    %vm546 = vcmp.lt.s32.totalorder %v525, 16
    %vm547 = vcmp.lt.s32.totalorder %v526, 16
    %vm548 = vcmp.lt.s32.totalorder %v527, 16
    %vm549 = vcmp.lt.s32.totalorder %v528, 16
    %vm550 = vcmp.lt.s32.totalorder %v533, 16
    %vm551 = vmand %vm534, %vm550
    %vm552 = vmand %vm535, %vm550
    %vm553 = vmand %vm536, %vm550
    %vm554 = vmand %vm537, %vm550
    %vm555 = vmand %vm538, %vm550
    %vm556 = vmand %vm539, %vm550
    %vm557 = vmand %vm540, %vm550
    %vm558 = vmand %vm541, %vm550
    %vm559 = vmand %vm542, %vm550
    %vm560 = vmand %vm543, %vm550
    %vm561 = vmand %vm544, %vm550
    %vm562 = vmand %vm545, %vm550
    %vm563 = vmand %vm546, %vm550
    %vm564 = vmand %vm547, %vm550
    %vm565 = vmand %vm548, %vm550
    %vm566 = vmand %vm549, %vm550
    %p567 = scmp.ne.s32.totalorder 0, 0
    // Predicated region
    $region22: #{tpu_custom_call.1} parent=1 // pred_check
      %p568 = pneg %p567
    $region23: #{tpu_custom_call.1} parent=1 // pred_check_branch
      %570 = sbr.rel (%p568) target = $region25
    $region24: #{tpu_custom_call.1} parent=1 // pred_region
      %v571 = vsub.f32 0.0, %v270
      %v572 = vsub.f32 0.0, %v271
      %v573 = vsub.f32 0.0, %v272
      %v574 = vsub.f32 0.0, %v273
      %v575 = vsub.f32 0.0, %v274
      %v576 = vsub.f32 0.0, %v275
      %v577 = vsub.f32 0.0, %v276
      %v578 = vsub.f32 0.0, %v277
      %v579 = vsub.f32 0.0, %v278
      %v580 = vsub.f32 0.0, %v279
      %v581 = vsub.f32 0.0, %v280
      %v582 = vsub.f32 0.0, %v281
      %v583 = vsub.f32 0.0, %v282
      %v584 = vsub.f32 0.0, %v283
      %v585 = vsub.f32 0.0, %v284
      %v586 = vsub.f32 0.0, %v285
      %v587 = vmin.f32 %v571, 0.0
      %v588 = vmin.f32 %v572, 0.0
      %v589 = vmin.f32 %v573, 0.0
      %v590 = vmin.f32 %v574, 0.0
      %v591 = vmin.f32 %v575, 0.0
      %v592 = vmin.f32 %v576, 0.0
      %v593 = vmin.f32 %v577, 0.0
      %v594 = vmin.f32 %v578, 0.0
      %v595 = vmin.f32 %v579, 0.0
      %v596 = vmin.f32 %v580, 0.0
      %v597 = vmin.f32 %v581, 0.0
      %v598 = vmin.f32 %v582, 0.0
      %v599 = vmin.f32 %v583, 0.0
      %v600 = vmin.f32 %v584, 0.0
      %v601 = vmin.f32 %v585, 0.0
      %v602 = vmin.f32 %v586, 0.0
      %v603 = vsub.f32 %v587, %v358
      %v604 = vsub.f32 %v588, %v367
      %v605 = vsub.f32 %v589, %v376
      %v606 = vsub.f32 %v590, %v385
      %v607 = vsub.f32 %v591, %v394
      %v608 = vsub.f32 %v592, %v403
      %v609 = vsub.f32 %v593, %v412
      %v610 = vsub.f32 %v594, %v421
      %v611 = vsub.f32 %v595, %v430
      %v612 = vsub.f32 %v596, %v439
      %v613 = vsub.f32 %v597, %v448
      %v614 = vsub.f32 %v598, %v457
      %v615 = vsub.f32 %v599, %v466
      %v616 = vsub.f32 %v600, %v475
      %v617 = vsub.f32 %v601, %v484
      %v618 = vsub.f32 %v602, %v493
      %v619 = vsel %vm551, %v603, 0.0
      %v620 = vsel %vm552, %v604, 0.0
      %v621 = vsel %vm553, %v605, 0.0
      %v622 = vsel %vm554, %v606, 0.0
      %v623 = vsel %vm555, %v607, 0.0
      %v624 = vsel %vm556, %v608, 0.0
      %v625 = vsel %vm557, %v609, 0.0
      %v626 = vsel %vm558, %v610, 0.0
      %v627 = vsel %vm559, %v611, 0.0
      %v628 = vsel %vm560, %v612, 0.0
      %v629 = vsel %vm561, %v613, 0.0
      %v630 = vsel %vm562, %v614, 0.0
      %v631 = vsel %vm563, %v615, 0.0
      %v632 = vsel %vm564, %v616, 0.0
      %v633 = vsel %vm565, %v617, 0.0
      %v634 = vsel %vm566, %v618, 0.0
      %v635 = vld [vmem:[#allocation2] sm:$0xff]
      %v636 = vld [vmem:[#allocation2 + $0x8] sm:$0xff]
      %v637 = vld [vmem:[#allocation2 + $0x10] sm:$0xff]
      %v638 = vld [vmem:[#allocation2 + $0x18] sm:$0xff]
      %v639 = vld [vmem:[#allocation2 + $0x20] sm:$0xff]
      %v640 = vld [vmem:[#allocation2 + $0x28] sm:$0xff]
      %v641 = vld [vmem:[#allocation2 + $0x30] sm:$0xff]
      %v642 = vld [vmem:[#allocation2 + $0x38] sm:$0xff]
      %v643 = vld [vmem:[#allocation2 + $0x40] sm:$0xff]
      %v644 = vld [vmem:[#allocation2 + $0x48] sm:$0xff]
      %v645 = vld [vmem:[#allocation2 + $0x50] sm:$0xff]
      %v646 = vld [vmem:[#allocation2 + $0x58] sm:$0xff]
      %v647 = vld [vmem:[#allocation2 + $0x60] sm:$0xff]
      %v648 = vld [vmem:[#allocation2 + $0x68] sm:$0xff]
      %v649 = vld [vmem:[#allocation2 + $0x70] sm:$0xff]
      %v650 = vld [vmem:[#allocation2 + $0x78] sm:$0xff]
      %v651 = vadd.f32 %v635, %v619
      %v652 = vadd.f32 %v636, %v620
      %v653 = vadd.f32 %v637, %v621
      %v654 = vadd.f32 %v638, %v622
      %v655 = vadd.f32 %v639, %v623
      %v656 = vadd.f32 %v640, %v624
      %v657 = vadd.f32 %v641, %v625
      %v658 = vadd.f32 %v642, %v626
      %v659 = vadd.f32 %v643, %v627
      %v660 = vadd.f32 %v644, %v628
      %v661 = vadd.f32 %v645, %v629
      %v662 = vadd.f32 %v646, %v630
      %v663 = vadd.f32 %v647, %v631
      %v664 = vadd.f32 %v648, %v632
      %v665 = vadd.f32 %v649, %v633
      %v666 = vadd.f32 %v650, %v634
      %667 = vst [vmem:[#allocation2] sm:$0xff] %v651
      %668 = vst [vmem:[#allocation2 + $0x8] sm:$0xff] %v652
      %669 = vst [vmem:[#allocation2 + $0x10] sm:$0xff] %v653
      %670 = vst [vmem:[#allocation2 + $0x18] sm:$0xff] %v654
      %671 = vst [vmem:[#allocation2 + $0x20] sm:$0xff] %v655
      %672 = vst [vmem:[#allocation2 + $0x28] sm:$0xff] %v656
      %673 = vst [vmem:[#allocation2 + $0x30] sm:$0xff] %v657
      %674 = vst [vmem:[#allocation2 + $0x38] sm:$0xff] %v658
      %675 = vst [vmem:[#allocation2 + $0x40] sm:$0xff] %v659
      %676 = vst [vmem:[#allocation2 + $0x48] sm:$0xff] %v660
      %677 = vst [vmem:[#allocation2 + $0x50] sm:$0xff] %v661
      %678 = vst [vmem:[#allocation2 + $0x58] sm:$0xff] %v662
      %679 = vst [vmem:[#allocation2 + $0x60] sm:$0xff] %v663
      %680 = vst [vmem:[#allocation2 + $0x68] sm:$0xff] %v664
      %681 = vst [vmem:[#allocation2 + $0x70] sm:$0xff] %v665
      %682 = vst [vmem:[#allocation2 + $0x78] sm:$0xff] %v666
    $region25: #{tpu_custom_call.1} parent=1 // pred_fallthru
      _
    %p683 = scmp.eq.s32.totalorder 0, 0
    // Predicated region
    $region26: #{tpu_custom_call.1} parent=1 // pred_check
      %p684 = pneg %p683
    $region27: #{tpu_custom_call.1} parent=1 // pred_check_branch
      %686 = sbr.rel (%p684) target = $region29
    $region28: #{tpu_custom_call.1} parent=1 // pred_region
      %vm687 = vcmp.eq.s32.totalorder %v496, %v531
      %vm688 = vcmp.eq.s32.totalorder %v497, %v531
      %vm689 = vcmp.eq.s32.totalorder %v498, %v531
      %vm690 = vcmp.eq.s32.totalorder %v499, %v531
      %vm691 = vcmp.eq.s32.totalorder %v500, %v531
      %vm692 = vcmp.eq.s32.totalorder %v501, %v531
      %vm693 = vcmp.eq.s32.totalorder %v502, %v531
      %vm694 = vcmp.eq.s32.totalorder %v503, %v531
      %vm695 = vcmp.eq.s32.totalorder %v504, %v531
      %vm696 = vcmp.eq.s32.totalorder %v505, %v531
      %vm697 = vcmp.eq.s32.totalorder %v506, %v531
      %vm698 = vcmp.eq.s32.totalorder %v507, %v531
      %vm699 = vcmp.eq.s32.totalorder %v508, %v531
      %vm700 = vcmp.eq.s32.totalorder %v509, %v531
      %vm701 = vcmp.eq.s32.totalorder %v510, %v531
      %vm702 = vcmp.eq.s32.totalorder %v511, %v531
      %v703 = vsub.f32 0.0, %v270
      %v704 = vsub.f32 0.0, %v271
      %v705 = vsub.f32 0.0, %v272
      %v706 = vsub.f32 0.0, %v273
      %v707 = vsub.f32 0.0, %v274
      %v708 = vsub.f32 0.0, %v275
      %v709 = vsub.f32 0.0, %v276
      %v710 = vsub.f32 0.0, %v277
      %v711 = vsub.f32 0.0, %v278
      %v712 = vsub.f32 0.0, %v279
      %v713 = vsub.f32 0.0, %v280
      %v714 = vsub.f32 0.0, %v281
      %v715 = vsub.f32 0.0, %v282
      %v716 = vsub.f32 0.0, %v283
      %v717 = vsub.f32 0.0, %v284
      %v718 = vsub.f32 0.0, %v285
      %v719 = vsel %vm687, %v270, %v703
      %v720 = vsel %vm688, %v271, %v704
      %v721 = vsel %vm689, %v272, %v705
      %v722 = vsel %vm690, %v273, %v706
      %v723 = vsel %vm691, %v274, %v707
      %v724 = vsel %vm692, %v275, %v708
      %v725 = vsel %vm693, %v276, %v709
      %v726 = vsel %vm694, %v277, %v710
      %v727 = vsel %vm695, %v278, %v711
      %v728 = vsel %vm696, %v279, %v712
      %v729 = vsel %vm697, %v280, %v713
      %v730 = vsel %vm698, %v281, %v714
      %v731 = vsel %vm699, %v282, %v715
      %v732 = vsel %vm700, %v283, %v716
      %v733 = vsel %vm701, %v284, %v717
      %v734 = vsel %vm702, %v285, %v718
      %v735 = vmin.f32 %v719, 0.0
      %v736 = vmin.f32 %v720, 0.0
      %v737 = vmin.f32 %v721, 0.0
      %v738 = vmin.f32 %v722, 0.0
      %v739 = vmin.f32 %v723, 0.0
      %v740 = vmin.f32 %v724, 0.0
      %v741 = vmin.f32 %v725, 0.0
      %v742 = vmin.f32 %v726, 0.0
      %v743 = vmin.f32 %v727, 0.0
      %v744 = vmin.f32 %v728, 0.0
      %v745 = vmin.f32 %v729, 0.0
      %v746 = vmin.f32 %v730, 0.0
      %v747 = vmin.f32 %v731, 0.0
      %v748 = vmin.f32 %v732, 0.0
      %v749 = vmin.f32 %v733, 0.0
      %v750 = vmin.f32 %v734, 0.0
      %v751 = vsub.f32 %v735, %v358
      %v752 = vsub.f32 %v736, %v367
      %v753 = vsub.f32 %v737, %v376
      %v754 = vsub.f32 %v738, %v385
      %v755 = vsub.f32 %v739, %v394
      %v756 = vsub.f32 %v740, %v403
      %v757 = vsub.f32 %v741, %v412
      %v758 = vsub.f32 %v742, %v421
      %v759 = vsub.f32 %v743, %v430
      %v760 = vsub.f32 %v744, %v439
      %v761 = vsub.f32 %v745, %v448
      %v762 = vsub.f32 %v746, %v457
      %v763 = vsub.f32 %v747, %v466
      %v764 = vsub.f32 %v748, %v475
      %v765 = vsub.f32 %v749, %v484
      %v766 = vsub.f32 %v750, %v493
      %v767 = vsel %vm551, %v751, 0.0
      %v768 = vsel %vm552, %v752, 0.0
      %v769 = vsel %vm553, %v753, 0.0
      %v770 = vsel %vm554, %v754, 0.0
      %v771 = vsel %vm555, %v755, 0.0
      %v772 = vsel %vm556, %v756, 0.0
      %v773 = vsel %vm557, %v757, 0.0
      %v774 = vsel %vm558, %v758, 0.0
      %v775 = vsel %vm559, %v759, 0.0
      %v776 = vsel %vm560, %v760, 0.0
      %v777 = vsel %vm561, %v761, 0.0
      %v778 = vsel %vm562, %v762, 0.0
      %v779 = vsel %vm563, %v763, 0.0
      %v780 = vsel %vm564, %v764, 0.0
      %v781 = vsel %vm565, %v765, 0.0
      %v782 = vsel %vm566, %v766, 0.0
      %v783 = vld [vmem:[#allocation2] sm:$0xff]
      %v784 = vld [vmem:[#allocation2 + $0x8] sm:$0xff]
      %v785 = vld [vmem:[#allocation2 + $0x10] sm:$0xff]
      %v786 = vld [vmem:[#allocation2 + $0x18] sm:$0xff]
      %v787 = vld [vmem:[#allocation2 + $0x20] sm:$0xff]
      %v788 = vld [vmem:[#allocation2 + $0x28] sm:$0xff]
      %v789 = vld [vmem:[#allocation2 + $0x30] sm:$0xff]
      %v790 = vld [vmem:[#allocation2 + $0x38] sm:$0xff]
      %v791 = vld [vmem:[#allocation2 + $0x40] sm:$0xff]
      %v792 = vld [vmem:[#allocation2 + $0x48] sm:$0xff]
      %v793 = vld [vmem:[#allocation2 + $0x50] sm:$0xff]
      %v794 = vld [vmem:[#allocation2 + $0x58] sm:$0xff]
      %v795 = vld [vmem:[#allocation2 + $0x60] sm:$0xff]
      %v796 = vld [vmem:[#allocation2 + $0x68] sm:$0xff]
      %v797 = vld [vmem:[#allocation2 + $0x70] sm:$0xff]
      %v798 = vld [vmem:[#allocation2 + $0x78] sm:$0xff]
      %v799 = vadd.f32 %v783, %v767
      %v800 = vadd.f32 %v784, %v768
      %v801 = vadd.f32 %v785, %v769
      %v802 = vadd.f32 %v786, %v770
      %v803 = vadd.f32 %v787, %v771
      %v804 = vadd.f32 %v788, %v772
      %v805 = vadd.f32 %v789, %v773
      %v806 = vadd.f32 %v790, %v774
      %v807 = vadd.f32 %v791, %v775
      %v808 = vadd.f32 %v792, %v776
      %v809 = vadd.f32 %v793, %v777
      %v810 = vadd.f32 %v794, %v778
      %v811 = vadd.f32 %v795, %v779
      %v812 = vadd.f32 %v796, %v780
      %v813 = vadd.f32 %v797, %v781
      %v814 = vadd.f32 %v798, %v782
      %815 = vst [vmem:[#allocation2] sm:$0xff] %v799
      %816 = vst [vmem:[#allocation2 + $0x8] sm:$0xff] %v800
      %817 = vst [vmem:[#allocation2 + $0x10] sm:$0xff] %v801
      %818 = vst [vmem:[#allocation2 + $0x18] sm:$0xff] %v802
      %819 = vst [vmem:[#allocation2 + $0x20] sm:$0xff] %v803
      %820 = vst [vmem:[#allocation2 + $0x28] sm:$0xff] %v804
      %821 = vst [vmem:[#allocation2 + $0x30] sm:$0xff] %v805
      %822 = vst [vmem:[#allocation2 + $0x38] sm:$0xff] %v806
      %823 = vst [vmem:[#allocation2 + $0x40] sm:$0xff] %v807
      %824 = vst [vmem:[#allocation2 + $0x48] sm:$0xff] %v808
      %825 = vst [vmem:[#allocation2 + $0x50] sm:$0xff] %v809
      %826 = vst [vmem:[#allocation2 + $0x58] sm:$0xff] %v810
      %827 = vst [vmem:[#allocation2 + $0x60] sm:$0xff] %v811
      %828 = vst [vmem:[#allocation2 + $0x68] sm:$0xff] %v812
      %829 = vst [vmem:[#allocation2 + $0x70] sm:$0xff] %v813
      %830 = vst [vmem:[#allocation2 + $0x78] sm:$0xff] %v814
    $region29: #{tpu_custom_call.1} parent=1 // pred_fallthru
      _
    // Predicated region
    $region30: #{tpu_custom_call.1} parent=1 // pred_check
      %p831 = pneg %p20
    $region31: #{tpu_custom_call.1} parent=1 // pred_check_branch
      %833 = sbr.rel (%p831) target = $region33
    $region32: #{tpu_custom_call.1} parent=1 // pred_region
      %v834 = vld [vmem:[#allocation2] sm:$0xff]
      %v835 = vld [vmem:[#allocation2 + $0x8] sm:$0xff]
      %v836 = vld [vmem:[#allocation2 + $0x10] sm:$0xff]
      %v837 = vld [vmem:[#allocation2 + $0x18] sm:$0xff]
      %v838 = vld [vmem:[#allocation2 + $0x20] sm:$0xff]
      %v839 = vld [vmem:[#allocation2 + $0x28] sm:$0xff]
      %v840 = vld [vmem:[#allocation2 + $0x30] sm:$0xff]
      %v841 = vld [vmem:[#allocation2 + $0x38] sm:$0xff]
      %v842 = vld [vmem:[#allocation2 + $0x40] sm:$0xff]
      %v843 = vld [vmem:[#allocation2 + $0x48] sm:$0xff]
      %v844 = vld [vmem:[#allocation2 + $0x50] sm:$0xff]
      %v845 = vld [vmem:[#allocation2 + $0x58] sm:$0xff]
      %v846 = vld [vmem:[#allocation2 + $0x60] sm:$0xff]
      %v847 = vld [vmem:[#allocation2 + $0x68] sm:$0xff]
      %v848 = vld [vmem:[#allocation2 + $0x70] sm:$0xff]
      %v849 = vld [vmem:[#allocation2 + $0x78] sm:$0xff]
      %v850 = vadd.f32 %v834, %v835
      %v851 = vadd.f32 %v850, %v836
      %v852 = vadd.f32 %v851, %v837
      %v853 = vadd.f32 %v852, %v838
      %v854 = vadd.f32 %v853, %v839
      %v855 = vadd.f32 %v854, %v840
      %v856 = vadd.f32 %v855, %v841
      %v857 = vadd.f32 %v856, %v842
      %v858 = vadd.f32 %v857, %v843
      %v859 = vadd.f32 %v858, %v844
      %v860 = vadd.f32 %v859, %v845
      %v861 = vadd.f32 %v860, %v846
      %v862 = vadd.f32 %v861, %v847
      %v863 = vadd.f32 %v862, %v848
      %v864 = vadd.f32 %v863, %v849
      %v865 = vrot.slane %v864, 4
      %v866 = vadd.f32 %v864, %v865
      %v867 = vrot.slane %v866, 2
      %v868 = vadd.f32 %v866, %v867
      %v869 = vrot.slane %v868, 1
      %v870 = vadd.f32 %v868, %v869
      %871 = vst [vmem:[#allocation5] sm:$0x1] %v870
    $region33: #{tpu_custom_call.1} parent=1 // pred_fallthru
      _
    // Predicated region
    $region34: #{tpu_custom_call.1} parent=1 // pred_check
      _
    $region35: #{tpu_custom_call.1} parent=1 // pred_check_branch
      %873 = sbr.rel (0) target = $region37
    $region36: #{tpu_custom_call.1} parent=1 // pred_region
      %875 = vsyncadd [#allocation6], 0
      %s877 = sshll.u32 [#allocation5], 4
      %s878 = int_to_ptr.vmem [resolvable:$true] %s877
      %s879 = sshll.u32 %s4, 4
      %s880 = int_to_ptr.hbm [resolvable:$true] %s879
      %882 = dma.vmem_to_hbm [thread:$0]  %s878, 16, %s880, [#allocation6]
    $region37: #{tpu_custom_call.1} parent=1 // pred_fallthru
      _
    // Predicated region
    $region38: #{tpu_custom_call.1} parent=1 // pred_check
      _
    $region39: #{tpu_custom_call.1} parent=1 // pred_check_branch
      %884 = sbr.rel (0) target = $region41
    $region40: #{tpu_custom_call.1} parent=1 // pred_region
      %886 = dma.done [#allocation6], 16
    $region41: #{tpu_custom_call.1} parent=1 // pred_fallthru
      _
    %887 = vsyncpa [#allocation6], 1

</llo_original>
